<compile_context>
chip_gen: v5e
topology: v5e:2x2
jax: 0.10.0
libtpu: 0.0.40
codegen_flags: <defaults>
</compile_context>

<pallas_src>
import math

import jax
import jax.numpy as jnp
from jax.experimental import pallas as pl
from jax.experimental.pallas import tpu as pltpu


def _round_up(v, m):
    return ((v + m - 1) // m) * m


def _make_logvar_kernel(t):
    inv_n = 1.0 / t
    # torch.var is unbiased (N-1 denominator).  For t == 1 this is NaN, which
    # deliberately propagates through clip and log to match torch's behaviour
    # -- do NOT "fix" it by clamping the NaN away.
    inv_nm1 = (1.0 / (t - 1)) if t > 1 else float("nan")

    def kernel(x_ref, s_ref, o_ref, sum_sc, ss_sc):
        # x_ref : (tm, tl)   tl lanes = (part of) g packed rows of length t
        # s_ref : (tl, g)    bf16 0/1 group-selection matrix slice
        # o_ref : (tm, g)    log(clamp(var)) per original row
        # sum_sc/ss_sc: (tm, g) f32 accumulators (persist across the k axis)
        k = pl.program_id(1)

        @pl.when(k == 0)
        def _init():
            sum_sc[...] = jnp.zeros_like(sum_sc)
            ss_sc[...] = jnp.zeros_like(ss_sc)

        x = x_ref[...]                       # native dtype (bf16 stays bf16)
        s = s_ref[...]                       # bf16 (exact for 0/1)

        # One-pass group sums on the MXU, f32 accumulate (no HIGHEST passes).
        sum_sc[...] += jnp.dot(x, s.astype(x.dtype),
                               preferred_element_type=jnp.float32)
        # Elementwise square in f32 (v5e's VPU has no bf16 path).
        xf = x.astype(jnp.float32)
        ss_sc[...] += jnp.dot(xf * xf, s.astype(jnp.float32),
                              preferred_element_type=jnp.float32)

        @pl.when(k == pl.num_programs(1) - 1)
        def _finalize():
            gsum = sum_sc[...]
            var = (ss_sc[...] - gsum * gsum * inv_n) * inv_nm1
            var = jnp.clip(var, 1e-6, 1e6)
            o_ref[...] = jnp.log(var).astype(o_ref.dtype)

    return kernel


def _tpu_tuning():
    """(vmem_limit_bytes, tile_budget_bytes, min_grid_steps) per generation."""
    kind = ""
    try:
        kind = jax.devices()[0].device_kind.lower()
    except Exception:
        pass
    if "v5" in kind or "v6" in kind:
        # 128 MiB physical VMEM: large resident blocks close the gap to the
        # HBM roofline; 64 MiB scoped limit leaves plenty of headroom.
        return 64 * 1024 * 1024, 24 * 1024 * 1024, 2
    # v7x (64 MiB / TC, 2 TCs) or unknown: conservative limit; require >= 4
    # grid steps so the megacore-sharded grid keeps 2 pipelined steps/core.
    return 32 * 1024 * 1024, 14 * 1024 * 1024, 4


def _pick_group_width(m, t, min_steps, row_mult):
    """Rows packed per 128-lane group: multiple of 128//gcd(t,128) (lane-dense
    input blocks), grown toward 128 (lane-dense output) while leaving enough
    rows for pipelined row tiles."""
    g_min = 128 // math.gcd(t, 128)
    if m % g_min != 0:
        return 1
    cands = [g for g in range(g_min, 129, g_min) if m % g == 0]
    for want_rows in (row_mult * min_steps, row_mult, 1):
        ok = [g for g in cands if m // g >= want_rows]
        if ok:
            return max(ok)
    return g_min


def _vmem_need(tm, tl, g, x_itemsize, out_itemsize):
    """Approximate live VMEM for one grid step (double-buffered pipeline)."""
    gl = max(g, 128)                 # lane-padded width of S / out / accum
    tl16 = _round_up(tl, 16)
    tm8 = _round_up(tm, 8)
    return (2 * tm8 * tl * x_itemsize        # input block (double-buffered)
            + 2 * tm8 * tl * 4               # f32 square / cast temporaries
            + 2 * tl16 * gl * 2              # bf16 selection matrix (padded)
            + 2 * tm8 * gl * out_itemsize    # output block
            + 2 * tm8 * gl * 4)              # f32 sum / sum-sq accumulators


def _pick_tiles(rows, lanes, g, x_itemsize, out_itemsize, budget, min_steps,
                row_mult):
    row_cands = sorted((d for d in range(row_mult, rows + 1, row_mult)
                        if rows % d == 0), reverse=True)
    if not row_cands:
        row_cands = [rows]           # full-extent block is always legal
    lane_cands = [lanes] + sorted((d for d in range(128, lanes, 128)
                                   if lanes % d == 0), reverse=True)

    def need(tm, tl):
        return _vmem_need(tm, tl, g, x_itemsize, out_itemsize)

    # 1) Keep the whole reduction resident (single lanes block); prefer row
    #    tiles that leave >= min_steps grid steps for pipelining/megacore.
    for target_steps in sorted({min_steps, 2, 1}, reverse=True):
        for tm in row_cands:
            if rows // tm < target_steps:
                continue
            if need(tm, lanes) <= budget:
                return tm, lanes

    # 2) Long-T fallback: tile the packed reduction (lane) axis; the f32
    #    accumulators bound VMEM regardless of T.
    best = (row_cands[-1], lane_cands[-1])
    best_area = 0
    for tm in row_cands:
        for tl in lane_cands:
            if need(tm, tl) <= budget:
                if tm * tl > best_area:
                    best_area, best = tm * tl, (tm, tl)
                break
    # TODO(synk): pad/mask the lane axis so non-divisible tl tilings are
    # possible when lanes has no convenient multiple-of-128 divisor.
    return best


def log_var_layer(x, dim=3):
    """Pallas implementation of LogVarLayer.forward (keepdim=True)."""
    x = jnp.asarray(x)
    ndim = x.ndim
    dim = dim % ndim

    # For the FBCNet default (dim == last axis) this moveaxis is a no-op and
    # the reshapes below are free (contiguous).
    # TODO(synk): for dim != last, reduce over the sublane axis in-kernel (or
    # index the original layout via the BlockSpec) instead of paying an HBM
    # transpose here.
    xt = jnp.moveaxis(x, dim, -1)
    lead_shape = xt.shape[:-1]
    t = xt.shape[-1]
    m = int(math.prod(lead_shape))

    if m == 0 or t == 0:
        var = jnp.var(xt.astype(jnp.float32), axis=-1, keepdims=True, ddof=1)
        out = jnp.log(jnp.clip(var, 1e-6, 1e6)).astype(x.dtype)
        return jnp.moveaxis(out, -1, dim)

    x_itemsize = jnp.dtype(x.dtype).itemsize
    out_itemsize = x_itemsize
    row_mult = max(8, 32 // max(x_itemsize, 1))   # sublane alignment per dtype

    vmem_limit, budget, min_steps = _tpu_tuning()

    g = _pick_group_width(m, t, min_steps, row_mult)
    rows = m // g
    lanes = g * t
    x2 = xt.reshape(rows, lanes)

    tm, tl = _pick_tiles(rows, lanes, g, x_itemsize, out_itemsize, budget,
                         min_steps, row_mult)
    grid = (rows // tm, lanes // tl)

    # 0/1 group-selection matrix (exact in bf16): S[l, j] = 1 iff lane l
    # belongs to group j (= l // t).
    lane_group = jnp.arange(lanes, dtype=jnp.int32) // t
    s_mat = (lane_group[:, None] ==
             jnp.arange(g, dtype=jnp.int32)[None, :]).astype(jnp.bfloat16)

    cost = pl.CostEstimate(
        flops=int(4 * m * t * g + 3 * m * t),
        transcendentals=int(m),
        bytes_accessed=int(m * t * x_itemsize + m * out_itemsize
                           + grid[0] * lanes * g * 2),
    )

    out2 = pl.pallas_call(
        _make_logvar_kernel(t),
        out_shape=jax.ShapeDtypeStruct((rows, g), x.dtype),
        grid_spec=pltpu.PrefetchScalarGridSpec(
            num_scalar_prefetch=0,
            grid=grid,
            in_specs=[
                pl.BlockSpec((tm, tl), lambda i, k: (i, k)),
                pl.BlockSpec((tl, g), lambda i, k: (k, 0)),
            ],
            out_specs=pl.BlockSpec((tm, g), lambda i, k: (i, 0)),
            scratch_shapes=[pltpu.VMEM((tm, g), jnp.float32),
                            pltpu.VMEM((tm, g), jnp.float32)],
        ),
        compiler_params=pltpu.CompilerParams(
            dimension_semantics=("parallel", "arbitrary"),
            vmem_limit_bytes=vmem_limit,
        ),
        cost_estimate=cost,
    )(x2, s_mat)

    # (rows, g) row-major order == original row order; restore keepdim shape.
    out = out2.reshape(lead_shape + (1,))
    return jnp.moveaxis(out, -1, dim)


def _reference(x, dim=3):
    # Pure-JAX reference matching torch semantics (unbiased var, keepdim).
    var = jnp.var(x.astype(jnp.float32), axis=dim, keepdims=True, ddof=1)
    return jnp.log(jnp.clip(var, 1e-6, 1e6)).astype(x.dtype)


if __name__ == "__main__":
    key = jax.random.PRNGKey(0)
    # FBCNet-style input: (batch, filterBands, channels, time); reduce dim=3.
    B, F, C, T = 2, 4, 16, 16
    x = jax.random.normal(key, (B, F, C, T), dtype=jnp.float32)

    out = jax.block_until_ready(log_var_layer(x, dim=3))
    ref = _reference(x, dim=3)

    assert out.shape == (B, F, C, 1), out.shape
    # Tolerance sized for the MXU's default (bf16-pass) precision used by the
    # in-kernel group reductions -- deliberately looser than 1e-5.
    assert jnp.allclose(out, ref, atol=3e-2, rtol=3e-2), float(
        jnp.max(jnp.abs(out - ref)))
    print("KERNEL_OK")
</pallas_src>

<mosaic_0001>
module attributes {stable_mosaic.version = 11 : i64} {
  func.func @kernel(%arg0: i32, %arg1: i32, %arg2: memref<8x256xf32, #tpu.memory_space<vmem>>, %arg3: memref<256x16xbf16, #tpu.memory_space<vmem>>, %arg4: memref<8x16xf32, #tpu.memory_space<vmem>>, %arg5: memref<8x16xf32, #tpu.memory_space<vmem>>, %arg6: memref<8x16xf32, #tpu.memory_space<vmem>>) attributes {dimension_semantics = [#tpu.dimension_semantics<parallel>, #tpu.dimension_semantics<arbitrary>], iteration_bounds = array<i64: 1, 1>, scalar_prefetch = 0 : i64, scratch_operands = 2 : i64, tpu.core_type = #tpu.core_type<tc>, window_params = [{transform_indices = @transform_0, window_bounds = array<i64: 8, 256>}, {transform_indices = @transform_1, window_bounds = array<i64: 256, 16>}, {transform_indices = @transform_2, window_bounds = array<i64: 8, 16>}]} {
    %c0_i32 = arith.constant 0 : i32
    %0 = arith.cmpi eq, %arg1, %c0_i32 : i32
    %1 = arith.extui %0 : i1 to i32
    %c0_i32_0 = arith.constant 0 : i32
    %2 = arith.cmpi ne, %1, %c0_i32_0 : i32
    scf.if %2 {
      %cst_15 = arith.constant 0.000000e+00 : f32
      %19 = vector.broadcast %cst_15 : f32 to vector<8x16xf32>
      %c0_16 = arith.constant 0 : index
      %c0_17 = arith.constant 0 : index
      %20 = vector.load %arg5[%c0_16, %c0_17] : memref<8x16xf32, #tpu.memory_space<vmem>>, vector<8x16xf32>
      tpu.vector_store %arg5[%c0_16, %c0_17], %19 {strides = array<i32>} : memref<8x16xf32, #tpu.memory_space<vmem>>, vector<8x16xf32>,
      %cst_18 = arith.constant 0.000000e+00 : f32
      %21 = vector.broadcast %cst_18 : f32 to vector<8x16xf32>
      %c0_19 = arith.constant 0 : index
      %c0_20 = arith.constant 0 : index
      %22 = vector.load %arg6[%c0_19, %c0_20] : memref<8x16xf32, #tpu.memory_space<vmem>>, vector<8x16xf32>
      tpu.vector_store %arg6[%c0_19, %c0_20], %21 {strides = array<i32>} : memref<8x16xf32, #tpu.memory_space<vmem>>, vector<8x16xf32>,
    } else {
    }
    %c0 = arith.constant 0 : index
    %c0_1 = arith.constant 0 : index
    %3 = vector.load %arg2[%c0, %c0_1] : memref<8x256xf32, #tpu.memory_space<vmem>>, vector<8x256xf32>
    %c0_2 = arith.constant 0 : index
    %c0_3 = arith.constant 0 : index
    %4 = vector.load %arg3[%c0_2, %c0_3] : memref<256x16xbf16, #tpu.memory_space<vmem>>, vector<256x16xbf16>
    %c0_4 = arith.constant 0 : index
    %c0_5 = arith.constant 0 : index
    %5 = vector.load %arg5[%c0_4, %c0_5] : memref<8x16xf32, #tpu.memory_space<vmem>>, vector<8x16xf32>
    %6 = arith.extf %4 : vector<256x16xbf16> to vector<256x16xf32>
    %cst = arith.constant dense<0.000000e+00> : vector<8x16xf32>
    %7 = tpu.matmul %3, %6, %cst {dimension_numbers = #tpu.dot_dimension_numbers<[1], [0], [0], [1], [0, 0, 1, 1], [], []>} : vector<8x256xf32>, vector<256x16xf32>, vector<8x16xf32> -> vector<8x16xf32>
    %8 = arith.addf %5, %7 : vector<8x16xf32>
    %c0_6 = arith.constant 0 : index
    %c0_7 = arith.constant 0 : index
    %9 = vector.load %arg5[%c0_6, %c0_7] : memref<8x16xf32, #tpu.memory_space<vmem>>, vector<8x16xf32>
    tpu.vector_store %arg5[%c0_6, %c0_7], %8 {strides = array<i32>} : memref<8x16xf32, #tpu.memory_space<vmem>>, vector<8x16xf32>,
    %c0_8 = arith.constant 0 : index
    %c0_9 = arith.constant 0 : index
    %10 = vector.load %arg6[%c0_8, %c0_9] : memref<8x16xf32, #tpu.memory_space<vmem>>, vector<8x16xf32>
    %11 = arith.mulf %3, %3 : vector<8x256xf32>
    %12 = arith.extf %4 : vector<256x16xbf16> to vector<256x16xf32>
    %cst_10 = arith.constant dense<0.000000e+00> : vector<8x16xf32>
    %13 = tpu.matmul %11, %12, %cst_10 {dimension_numbers = #tpu.dot_dimension_numbers<[1], [0], [0], [1], [0, 0, 1, 1], [], []>} : vector<8x256xf32>, vector<256x16xf32>, vector<8x16xf32> -> vector<8x16xf32>
    %14 = arith.addf %10, %13 : vector<8x16xf32>
    %c0_11 = arith.constant 0 : index
    %c0_12 = arith.constant 0 : index
    %15 = vector.load %arg6[%c0_11, %c0_12] : memref<8x16xf32, #tpu.memory_space<vmem>>, vector<8x16xf32>
    tpu.vector_store %arg6[%c0_11, %c0_12], %14 {strides = array<i32>} : memref<8x16xf32, #tpu.memory_space<vmem>>, vector<8x16xf32>,
    %c0_i32_13 = arith.constant 0 : i32
    %16 = arith.cmpi eq, %arg1, %c0_i32_13 : i32
    %17 = arith.extui %16 : i1 to i32
    %c0_i32_14 = arith.constant 0 : i32
    %18 = arith.cmpi ne, %17, %c0_i32_14 : i32
    scf.if %18 {
      %c0_15 = arith.constant 0 : index
      %c0_16 = arith.constant 0 : index
      %19 = vector.load %arg5[%c0_15, %c0_16] : memref<8x16xf32, #tpu.memory_space<vmem>>, vector<8x16xf32>
      %c0_17 = arith.constant 0 : index
      %c0_18 = arith.constant 0 : index
      %20 = vector.load %arg6[%c0_17, %c0_18] : memref<8x16xf32, #tpu.memory_space<vmem>>, vector<8x16xf32>
      %21 = arith.mulf %19, %19 : vector<8x16xf32>
      %cst_19 = arith.constant 6.250000e-02 : f32
      %22 = vector.broadcast %cst_19 : f32 to vector<8x16xf32>
      %23 = arith.mulf %21, %22 : vector<8x16xf32>
      %24 = arith.subf %20, %23 : vector<8x16xf32>
      %cst_20 = arith.constant 0.0666666701 : f32
      %25 = vector.broadcast %cst_20 : f32 to vector<8x16xf32>
      %26 = arith.mulf %24, %25 : vector<8x16xf32>
      %cst_21 = arith.constant 9.99999997E-7 : f32
      %cst_22 = arith.constant 1.000000e+06 : f32
      %27 = vector.broadcast %cst_21 : f32 to vector<8x16xf32>
      %28 = arith.maximumf %27, %26 : vector<8x16xf32>
      %29 = vector.broadcast %cst_22 : f32 to vector<8x16xf32>
      %30 = arith.minimumf %29, %28 : vector<8x16xf32>
      %31 = math.log %30 : vector<8x16xf32>
      %c0_23 = arith.constant 0 : index
      %c0_24 = arith.constant 0 : index
      %32 = vector.load %arg4[%c0_23, %c0_24] : memref<8x16xf32, #tpu.memory_space<vmem>>, vector<8x16xf32>
      tpu.vector_store %arg4[%c0_23, %c0_24], %31 {strides = array<i32>} : memref<8x16xf32, #tpu.memory_space<vmem>>, vector<8x16xf32>,
    } else {
    }
    return
  }
  func.func @transform_0(%arg0: i32, %arg1: i32) -> (i32, i32) {
    %c0_i32 = arith.constant 0 : i32
    return %arg0, %arg1 : i32, i32
  }
  func.func @transform_1(%arg0: i32, %arg1: i32) -> (i32, i32) {
    %c0_i32 = arith.constant 0 : i32
    %c0_i32_0 = arith.constant 0 : i32
    return %arg1, %c0_i32 : i32, i32
  }
  func.func @transform_2(%arg0: i32, %arg1: i32) -> (i32, i32) {
    %c0_i32 = arith.constant 0 : i32
    %c0_i32_0 = arith.constant 0 : i32
    return %arg0, %c0_i32 : i32, i32
  }
}

</mosaic_0001>

<llo_original>
// kernel: tpu_custom_call.1
$region0: #{tpu_custom_call.1}
  #allocation0 [shape = 'u32[]', space=smem, size = 0x4, offset = 0x4, fixed_abs, tag = 'smem constant byte address 0x4 - core index']
  #allocation1 [shape = 'u32[72,128]{1,0:T(1,128)}', space=vmem, size = 0x9000, scoped, tag = 'internal scratch']
  #allocation2 [shape = 'f32[8,16]{1,0:T(8,128)}', space=vmem, size = 0x1000, scoped, tag = 'scratch operand']
  #allocation3 [shape = 'f32[8,16]{1,0:T(8,128)}', space=vmem, size = 0x1000, scoped, tag = 'scratch operand']
  %s0 = inlined_call_operand.vmem [shape: f32[8,256], index: 0, kind: input, shape index: {}]
  %s1 = inlined_call_operand.vmem [shape: bf16[256,16], index: 1, kind: input, shape index: {}]
  %s2 = inlined_call_operand.hbm [shape: f32[8,16], index: 2, kind: output, shape index: {}]
  %s3 = sld [smem:[#allocation0]]
  $region26: #{tpu_custom_call.1} parent=0
    _
  %s5 = ssub.s32 1, %s3
  %s6 = scalar_select 0, %s5, %s3
  $region1: #{tpu_custom_call.1} parent=0
    #allocation4 [shape = 'u8[4096]{0}', space=vmem, size = 0x1000, scoped, tag = 'output window, operand 0, single buffered']
    #allocation5 [shape = 's32[1]{0}', space=sflag, size = 0x4, scoped, tag = 'scoped memory for tpu_custom_call.1']
    %7 = vsyncpa [#allocation5], 0
    // Predicated region
    $region2: #{tpu_custom_call.1} parent=1 // pred_check
      _
    $region3: #{tpu_custom_call.1} parent=1 // pred_check_branch
      %9 = sbr.rel (0) target = $region5
    $region4: #{tpu_custom_call.1} parent=1 // pred_region
      _
    $region5: #{tpu_custom_call.1} parent=1 // pred_fallthru
      _
    // Predicated region
    $region6: #{tpu_custom_call.1} parent=1 // pred_check
      _
    $region7: #{tpu_custom_call.1} parent=1 // pred_check_branch
      %11 = sbr.rel (0) target = $region9
    $region8: #{tpu_custom_call.1} parent=1 // pred_region
      _
    $region9: #{tpu_custom_call.1} parent=1 // pred_fallthru
      _
    %p12 = scmp.eq.s32.totalorder 0, 0
    // Predicated region
    $region10: #{tpu_custom_call.1} parent=1 // pred_check
      %p13 = pneg %p12
    $region11: #{tpu_custom_call.1} parent=1 // pred_check_branch
      %15 = sbr.rel (%p13) target = $region13
    $region12: #{tpu_custom_call.1} parent=1 // pred_region
      %vm16 = vcmask 130048
      %17 = vst.msk [vmem:[#allocation2] sm:$0xff] %vm16, 0.0
      %18 = vst.msk [vmem:[#allocation3] sm:$0xff] %vm16, 0.0
    $region13: #{tpu_custom_call.1} parent=1 // pred_fallthru
      _
    %v19 = vld [vmem:[%s0] sm:$0xff]
    %v20 = vld [vmem:[%s0 + $0x8] sm:$0xff]
    %v21 = vld [vmem:[%s1] sm:$0xf]
    %v22 = vld [vmem:[%s1 + $0x4] sm:$0xf]
    %v23 = vld [vmem:[%s1 + $0x8] sm:$0xf]
    %v24 = vld [vmem:[%s1 + $0xc] sm:$0xf]
    %v25 = vld [vmem:[%s1 + $0x10] sm:$0xf]
    %v26 = vld [vmem:[%s1 + $0x14] sm:$0xf]
    %v27 = vld [vmem:[%s1 + $0x18] sm:$0xf]
    %v28 = vld [vmem:[%s1 + $0x1c] sm:$0xf]
    %v29 = vld [vmem:[%s1 + $0x20] sm:$0xf]
    %v30 = vld [vmem:[%s1 + $0x24] sm:$0xf]
    %v31 = vld [vmem:[%s1 + $0x28] sm:$0xf]
    %v32 = vld [vmem:[%s1 + $0x2c] sm:$0xf]
    %v33 = vld [vmem:[%s1 + $0x30] sm:$0xf]
    %v34 = vld [vmem:[%s1 + $0x34] sm:$0xf]
    %v35 = vld [vmem:[%s1 + $0x38] sm:$0xf]
    %v36 = vld [vmem:[%s1 + $0x3c] sm:$0xf]
    %v37 = vld [vmem:[%s1 + $0x40] sm:$0xf]
    %v38 = vld [vmem:[%s1 + $0x44] sm:$0xf]
    %v39 = vld [vmem:[%s1 + $0x48] sm:$0xf]
    %v40 = vld [vmem:[%s1 + $0x4c] sm:$0xf]
    %v41 = vld [vmem:[%s1 + $0x50] sm:$0xf]
    %v42 = vld [vmem:[%s1 + $0x54] sm:$0xf]
    %v43 = vld [vmem:[%s1 + $0x58] sm:$0xf]
    %v44 = vld [vmem:[%s1 + $0x5c] sm:$0xf]
    %v45 = vld [vmem:[%s1 + $0x60] sm:$0xf]
    %v46 = vld [vmem:[%s1 + $0x64] sm:$0xf]
    %v47 = vld [vmem:[%s1 + $0x68] sm:$0xf]
    %v48 = vld [vmem:[%s1 + $0x6c] sm:$0xf]
    %v49 = vld [vmem:[%s1 + $0x70] sm:$0xf]
    %v50 = vld [vmem:[%s1 + $0x74] sm:$0xf]
    %v51 = vld [vmem:[%s1 + $0x78] sm:$0xf]
    %v52 = vld [vmem:[%s1 + $0x7c] sm:$0xf]
    %v53 = vld [vmem:[#allocation2] sm:$0xff]
    %v54 = vunpack.c.l.bf16 %v21
    %v55 = vunpack.c.l.bf16 %v22
    %v56 = vunpack.c.l.bf16 %v23
    %v57 = vunpack.c.l.bf16 %v24
    %v58 = vunpack.c.l.bf16 %v25
    %v59 = vunpack.c.l.bf16 %v26
    %v60 = vunpack.c.l.bf16 %v27
    %v61 = vunpack.c.l.bf16 %v28
    %v62 = vunpack.c.l.bf16 %v29
    %v63 = vunpack.c.l.bf16 %v30
    %v64 = vunpack.c.l.bf16 %v31
    %v65 = vunpack.c.l.bf16 %v32
    %v66 = vunpack.c.l.bf16 %v33
    %v67 = vunpack.c.l.bf16 %v34
    %v68 = vunpack.c.l.bf16 %v35
    %v69 = vunpack.c.l.bf16 %v36
    %v70 = vunpack.c.l.bf16 %v37
    %v71 = vunpack.c.l.bf16 %v38
    %v72 = vunpack.c.l.bf16 %v39
    %v73 = vunpack.c.l.bf16 %v40
    %v74 = vunpack.c.l.bf16 %v41
    %v75 = vunpack.c.l.bf16 %v42
    %v76 = vunpack.c.l.bf16 %v43
    %v77 = vunpack.c.l.bf16 %v44
    %v78 = vunpack.c.l.bf16 %v45
    %v79 = vunpack.c.l.bf16 %v46
    %v80 = vunpack.c.l.bf16 %v47
    %v81 = vunpack.c.l.bf16 %v48
    %v82 = vunpack.c.l.bf16 %v49
    %v83 = vunpack.c.l.bf16 %v50
    %v84 = vunpack.c.l.bf16 %v51
    %v85 = vunpack.c.l.bf16 %v52
    %86 = vmatpush.msra.mxu0 %v69
    %87 = vmatpush.msra.mxu0 %v68
    %88 = vmatpush.msra.mxu0 %v67
    %89 = vmatpush.msra.mxu0 %v66
    %90 = vmatpush.msra.mxu0 %v65
    %91 = vmatpush.msra.mxu0 %v64
    %92 = vmatpush.msra.mxu0 %v63
    %93 = vmatpush.msra.mxu0 %v62
    %94 = vmatpush.msra.mxu0 %v61
    %95 = vmatpush.msra.mxu0 %v60
    %96 = vmatpush.msra.mxu0 %v59
    %97 = vmatpush.msra.mxu0 %v58
    %98 = vmatpush.msra.mxu0 %v57
    %99 = vmatpush.msra.mxu0 %v56
    %100 = vmatpush.msra.mxu0 %v55
    %101 = vmatpush.msra.mxu0 %v54
    %102 = vmatmul.f32.gmra.mxu0 %v19
    %v103 = vpop.f32.mrf.mxu0
    %v104 = vadd.f32 0.0, %v103
    %105 = vdwg.mxu0
    %106 = vmatpush.msra.mxu0 %v85
    %107 = vmatpush.msra.mxu0 %v84
    %108 = vmatpush.msra.mxu0 %v83
    %109 = vmatpush.msra.mxu0 %v82
    %110 = vmatpush.msra.mxu0 %v81
    %111 = vmatpush.msra.mxu0 %v80
    %112 = vmatpush.msra.mxu0 %v79
    %113 = vmatpush.msra.mxu0 %v78
    %114 = vmatpush.msra.mxu0 %v77
    %115 = vmatpush.msra.mxu0 %v76
    %116 = vmatpush.msra.mxu0 %v75
    %117 = vmatpush.msra.mxu0 %v74
    %118 = vmatpush.msra.mxu0 %v73
    %119 = vmatpush.msra.mxu0 %v72
    %120 = vmatpush.msra.mxu0 %v71
    %121 = vmatpush.msra.mxu0 %v70
    %122 = vmatmul.f32.gmra.mxu0 %v20
    %v123 = vpop.f32.mrf.mxu0
    %v124 = vadd.f32 %v104, %v123
    %125 = vdwg.mxu0
    %v126 = vadd.f32 %v53, %v124
    %vm127 = vcmask 130048
    %128 = vst.msk [vmem:[#allocation2] sm:$0xff] %vm127, %v126
    %v129 = vld [vmem:[#allocation3] sm:$0xff]
    %v130 = vmul.f32 %v19, %v19
    %v131 = vmul.f32 %v20, %v20
    %132 = vmatpush.msra.mxu0 %v69
    %133 = vmatpush.msra.mxu0 %v68
    %134 = vmatpush.msra.mxu0 %v67
    %135 = vmatpush.msra.mxu0 %v66
    %136 = vmatpush.msra.mxu0 %v65
    %137 = vmatpush.msra.mxu0 %v64
    %138 = vmatpush.msra.mxu0 %v63
    %139 = vmatpush.msra.mxu0 %v62
    %140 = vmatpush.msra.mxu0 %v61
    %141 = vmatpush.msra.mxu0 %v60
    %142 = vmatpush.msra.mxu0 %v59
    %143 = vmatpush.msra.mxu0 %v58
    %144 = vmatpush.msra.mxu0 %v57
    %145 = vmatpush.msra.mxu0 %v56
    %146 = vmatpush.msra.mxu0 %v55
    %147 = vmatpush.msra.mxu0 %v54
    %148 = vmatmul.f32.gmra.mxu0 %v130
    %v149 = vpop.f32.mrf.mxu0
    %v150 = vadd.f32 0.0, %v149
    %151 = vdwg.mxu0
    %152 = vmatpush.msra.mxu0 %v85
    %153 = vmatpush.msra.mxu0 %v84
    %154 = vmatpush.msra.mxu0 %v83
    %155 = vmatpush.msra.mxu0 %v82
    %156 = vmatpush.msra.mxu0 %v81
    %157 = vmatpush.msra.mxu0 %v80
    %158 = vmatpush.msra.mxu0 %v79
    %159 = vmatpush.msra.mxu0 %v78
    %160 = vmatpush.msra.mxu0 %v77
    %161 = vmatpush.msra.mxu0 %v76
    %162 = vmatpush.msra.mxu0 %v75
    %163 = vmatpush.msra.mxu0 %v74
    %164 = vmatpush.msra.mxu0 %v73
    %165 = vmatpush.msra.mxu0 %v72
    %166 = vmatpush.msra.mxu0 %v71
    %167 = vmatpush.msra.mxu0 %v70
    %168 = vmatmul.f32.gmra.mxu0 %v131
    %v169 = vpop.f32.mrf.mxu0
    %v170 = vadd.f32 %v150, %v169
    %171 = vdwg.mxu0
    %v172 = vadd.f32 %v129, %v170
    %173 = vst.msk [vmem:[#allocation3] sm:$0xff] %vm127, %v172
    // Predicated region
    $region14: #{tpu_custom_call.1} parent=1 // pred_check
      %p174 = pneg %p12
    $region15: #{tpu_custom_call.1} parent=1 // pred_check_branch
      %176 = sbr.rel (%p174) target = $region17
    $region16: #{tpu_custom_call.1} parent=1 // pred_region
      %v177 = vld [vmem:[#allocation2] sm:$0xff]
      %v178 = vld [vmem:[#allocation3] sm:$0xff]
      %v179 = vmul.f32 %v177, %v177
      %v180 = vmul.f32 %v179, 0.0625
      %v181 = vsub.f32 %v178, %v180
      %v182 = vmul.f32 %v181, 0.06666667
      %v183 = vmax.f32 %v182, 1e-06
      %v184 = vmin.f32 %v183, 1000000.0
      %v185 = vlog2.pop %v184
      %v186 = vmul.f32 %v185, 0.6931472
      %187 = vst.msk [vmem:[#allocation4] sm:$0xff] %vm127, %v186
    $region17: #{tpu_custom_call.1} parent=1 // pred_fallthru
      _
    // Predicated region
    $region18: #{tpu_custom_call.1} parent=1 // pred_check
      _
    $region19: #{tpu_custom_call.1} parent=1 // pred_check_branch
      %189 = sbr.rel (0) target = $region21
    $region20: #{tpu_custom_call.1} parent=1 // pred_region
      %191 = vsyncadd [#allocation5], 0
      %s193 = sshll.u32 [#allocation4], 4
      %s194 = int_to_ptr.vmem [resolvable:$true] %s193
      %s195 = sshll.u32 %s2, 4
      %s196 = int_to_ptr.hbm [resolvable:$true] %s195
      %198 = dma.vmem_to_hbm [thread:$0]  %s194, 128, %s196, [#allocation5]
    $region21: #{tpu_custom_call.1} parent=1 // pred_fallthru
      _
    // Predicated region
    $region22: #{tpu_custom_call.1} parent=1 // pred_check
      _
    $region23: #{tpu_custom_call.1} parent=1 // pred_check_branch
      %200 = sbr.rel (0) target = $region25
    $region24: #{tpu_custom_call.1} parent=1 // pred_region
      %202 = dma.done [#allocation5], 128
    $region25: #{tpu_custom_call.1} parent=1 // pred_fallthru
      _
    %203 = vsyncpa [#allocation5], 1

</llo_original>
